<compile_context>
chip_gen: v7x
topology: tpu7x:2x2x1
jax: 0.10.0
libtpu: 0.0.40
codegen_flags: <defaults>
</compile_context>

<pallas_src>
import jax
import jax.numpy as jnp
from jax.experimental import pallas as pl
from jax.experimental.pallas import tpu as pltpu


def _round_up(x, m):
    return ((x + m - 1) // m) * m


def _resident_gather_kernel(ids_ref, table_ref, out_ref):
    """ids_ref: SMEM (B_pad,) int32; table_ref: VMEM (S, D) resident table;
    out_ref: VMEM (TB, D) dense output chunk for this grid step."""
    tb = out_ref.shape[0]
    base = pl.program_id(0) * tb

    def body(r, carry):
        idx = ids_ref[base + r]
        out_ref[pl.ds(r, 1), :] = table_ref[pl.ds(idx, 1), :]
        return carry

    jax.lax.fori_loop(0, tb, body, 0, unroll=8)


def _dma_gather_kernel(ids_ref, table_hbm_ref, out_ref, rows_vmem, copy_sems):
    """ids_ref: SMEM (B_pad,) int32; table_hbm_ref: raw HBM (S, D) table;
    out_ref: VMEM (G, D) output chunk; rows_vmem/copy_sems: (G, D) slab + sems."""
    g_rows = out_ref.shape[0]
    base = pl.program_id(0) * g_rows

    # Issue all G row fetches first so their HBM latencies overlap.
    @pl.loop(0, g_rows)
    def _issue(g):
        idx = ids_ref[base + g]
        pltpu.make_async_copy(
            table_hbm_ref.at[pl.ds(idx, 1), :],
            rows_vmem.at[pl.ds(g, 1), :],
            copy_sems.at[g],
        ).start()

    @pl.loop(0, g_rows)
    def _wait(g):
        pltpu.make_async_copy(
            table_hbm_ref.at[pl.ds(0, 1), :],
            rows_vmem.at[pl.ds(g, 1), :],
            copy_sems.at[g],
        ).wait()

    out_ref[...] = rows_vmem[...]


def speaker_embedding(speaker_ids, table, *, block_rows=256, dma_rows=32,
                      vmem_table_budget_bytes=24 * 1024 * 1024,
                      force_dma_gather=False):
    """Pallas equivalent of torch.nn.Embedding(num_speakers, embedding_dim)(speaker_ids).

    NOTE: for truly tiny lookups (a few hundred bytes) a production wrapper
    would route to plain `jnp.take` and skip the kernel launch entirely; here
    we always take the Pallas path so the kernel is exercised.
    """
    orig_shape = speaker_ids.shape
    S, D = table.shape
    out_dtype = table.dtype

    ids_flat = speaker_ids.reshape(-1).astype(jnp.int32)
    B = ids_flat.shape[0]
    if B == 0:
        return jnp.zeros(orig_shape + (D,), dtype=out_dtype)

    # Clamp like jnp.take's default mode (deviates from torch, which raises).
    ids_flat = jnp.clip(ids_flat, 0, S - 1)

    table_bytes = S * D * table.dtype.itemsize
    use_resident = (not force_dma_gather) and (table_bytes <= vmem_table_budget_bytes)

    rows_per_step = block_rows if use_resident else dma_rows
    tb = max(8, min(_round_up(rows_per_step, 8), _round_up(B, 8)))  # sublane-aligned chunk
    b_pad = _round_up(B, tb)
    if b_pad != B:
        ids_flat = jnp.pad(ids_flat, (0, b_pad - B))  # pad ids gather row 0, sliced off below
    num_chunks = b_pad // tb

    compiler_params = pltpu.CompilerParams(
        dimension_semantics=("parallel",),     # v7x: split chunks across the 2 TCs
        vmem_limit_bytes=32 * 1024 * 1024,     # > v5e 16 MiB scoped default, < v7x 64 MiB phys
    )

    if use_resident:
        out_padded = pl.pallas_call(
            _resident_gather_kernel,
            out_shape=jax.ShapeDtypeStruct((b_pad, D), out_dtype),
            grid_spec=pltpu.PrefetchScalarGridSpec(
                num_scalar_prefetch=1,                        # ids land in SMEM
                grid=(num_chunks,),
                in_specs=[
                    # Constant index_map => table is DMA'd once and stays
                    # resident in VMEM for the whole grid.
                    pl.BlockSpec((S, D), lambda i, ids: (0, 0)),
                ],
                out_specs=pl.BlockSpec((tb, D), lambda i, ids: (i, 0)),
            ),
            compiler_params=compiler_params,
        )(ids_flat, table)
    else:
        # Large-table path: manual multi-row DMA gather, G rows per grid step.
        # TODO(synk): for enormous D one could additionally tile the table along
        # D; unnecessary for typical speaker-embedding sizes.
        out_padded = pl.pallas_call(
            _dma_gather_kernel,
            out_shape=jax.ShapeDtypeStruct((b_pad, D), out_dtype),
            grid_spec=pltpu.PrefetchScalarGridSpec(
                num_scalar_prefetch=1,
                grid=(num_chunks,),
                in_specs=[pl.BlockSpec(memory_space=pl.ANY)],  # table stays in HBM
                out_specs=pl.BlockSpec((tb, D), lambda i, ids: (i, 0)),
                scratch_shapes=[
                    pltpu.VMEM((tb, D), out_dtype),
                    pltpu.SemaphoreType.DMA((tb,)),
                ],
            ),
            compiler_params=compiler_params,
        )(ids_flat, table)

    out = out_padded[:B] if b_pad != B else out_padded
    return out.reshape(*orig_shape, D)


if __name__ == "__main__":
    key = jax.random.PRNGKey(0)
    k_tab, k_ids, k_tab2, k_ids2 = jax.random.split(key, 4)

    # --- Case 1: module defaults (num_speakers=16, embedding_dim=8, batch=8). ---
    table = jax.random.normal(k_tab, (16, 8), dtype=jnp.float32)   # nn.Embedding ~ N(0,1)
    speaker_ids = jax.random.randint(k_ids, (8,), 0, 16, dtype=jnp.int32)

    out = jax.block_until_ready(speaker_embedding(speaker_ids, table))
    ref = jnp.take(table, speaker_ids, axis=0)
    assert out.shape == (8, 8)
    assert jnp.allclose(out, ref, atol=1e-6), "case 1: mismatch vs reference"

    # --- Case 2: larger 2-D batch, exercises chunking + padding on the
    #     table-resident path (300x128 table, 1000 lookups -> 4 chunks of 256). ---
    table2 = jax.random.normal(k_tab2, (300, 128), dtype=jnp.float32)
    ids2 = jax.random.randint(k_ids2, (4, 250), 0, 300, dtype=jnp.int32)

    out2 = jax.block_until_ready(speaker_embedding(ids2, table2))
    ref2 = jnp.take(table2, ids2, axis=0)
    assert out2.shape == (4, 250, 128)
    assert jnp.allclose(out2, ref2, atol=1e-6), "case 2: mismatch vs reference"

    # --- Case 3: same lookup forced through the large-table manual-DMA path. ---
    out3 = jax.block_until_ready(
        speaker_embedding(ids2, table2, force_dma_gather=True))
    assert jnp.allclose(out3, ref2, atol=1e-6), "case 3: mismatch vs reference"

    print("KERNEL_OK")
</pallas_src>

<mosaic_0001>
module attributes {stable_mosaic.version = 11 : i64} {
  func.func @_resident_gather_kernel(%arg0: i32, %arg1: memref<8xi32, #tpu.memory_space<smem>>, %arg2: memref<16x8xf32, #tpu.memory_space<vmem>>, %arg3: memref<8x8xf32, #tpu.memory_space<vmem>>) attributes {dimension_semantics = [#tpu.dimension_semantics<parallel>], iteration_bounds = array<i64: 1>, scalar_prefetch = 1 : i64, scratch_operands = 0 : i64, tpu.core_type = #tpu.core_type<tc>, window_params = [{pipeline_mode = #tpu.pipeline_mode<synchronous>, transform_indices = @transform_0, window_bounds = array<i64: 16, 8>}, {transform_indices = @transform_1, window_bounds = array<i64: 8, 8>}]} {
    %c8_i32 = arith.constant 8 : i32
    %0 = arith.muli %arg0, %c8_i32 : i32
    %c0_i32 = arith.constant 0 : i32
    %1 = arith.addi %0, %c0_i32 : i32
    %2 = arith.index_cast %1 : i32 to index
    %3 = memref.load %arg1[%2] : memref<8xi32, #tpu.memory_space<smem>>
    %4 = arith.index_cast %3 : i32 to index
    %c0 = arith.constant 0 : index
    %5 = vector.load %arg2[%4, %c0] : memref<16x8xf32, #tpu.memory_space<vmem>>, vector<1x8xf32>
    %6 = arith.index_cast %c0_i32 : i32 to index
    %c0_0 = arith.constant 0 : index
    %7 = vector.load %arg3[%6, %c0_0] : memref<8x8xf32, #tpu.memory_space<vmem>>, vector<1x8xf32>
    tpu.vector_store %arg3[%6, %c0_0], %5 {strides = array<i32>} : memref<8x8xf32, #tpu.memory_space<vmem>>, vector<1x8xf32>,
    %c1_i32 = arith.constant 1 : i32
    %8 = arith.addi %0, %c1_i32 : i32
    %9 = arith.index_cast %8 : i32 to index
    %10 = memref.load %arg1[%9] : memref<8xi32, #tpu.memory_space<smem>>
    %11 = arith.index_cast %10 : i32 to index
    %c0_1 = arith.constant 0 : index
    %12 = vector.load %arg2[%11, %c0_1] : memref<16x8xf32, #tpu.memory_space<vmem>>, vector<1x8xf32>
    %13 = arith.index_cast %c1_i32 : i32 to index
    %c0_2 = arith.constant 0 : index
    %14 = vector.load %arg3[%13, %c0_2] : memref<8x8xf32, #tpu.memory_space<vmem>>, vector<1x8xf32>
    tpu.vector_store %arg3[%13, %c0_2], %12 {strides = array<i32>} : memref<8x8xf32, #tpu.memory_space<vmem>>, vector<1x8xf32>,
    %c2_i32 = arith.constant 2 : i32
    %15 = arith.addi %0, %c2_i32 : i32
    %16 = arith.index_cast %15 : i32 to index
    %17 = memref.load %arg1[%16] : memref<8xi32, #tpu.memory_space<smem>>
    %18 = arith.index_cast %17 : i32 to index
    %c0_3 = arith.constant 0 : index
    %19 = vector.load %arg2[%18, %c0_3] : memref<16x8xf32, #tpu.memory_space<vmem>>, vector<1x8xf32>
    %20 = arith.index_cast %c2_i32 : i32 to index
    %c0_4 = arith.constant 0 : index
    %21 = vector.load %arg3[%20, %c0_4] : memref<8x8xf32, #tpu.memory_space<vmem>>, vector<1x8xf32>
    tpu.vector_store %arg3[%20, %c0_4], %19 {strides = array<i32>} : memref<8x8xf32, #tpu.memory_space<vmem>>, vector<1x8xf32>,
    %c3_i32 = arith.constant 3 : i32
    %22 = arith.addi %0, %c3_i32 : i32
    %23 = arith.index_cast %22 : i32 to index
    %24 = memref.load %arg1[%23] : memref<8xi32, #tpu.memory_space<smem>>
    %25 = arith.index_cast %24 : i32 to index
    %c0_5 = arith.constant 0 : index
    %26 = vector.load %arg2[%25, %c0_5] : memref<16x8xf32, #tpu.memory_space<vmem>>, vector<1x8xf32>
    %27 = arith.index_cast %c3_i32 : i32 to index
    %c0_6 = arith.constant 0 : index
    %28 = vector.load %arg3[%27, %c0_6] : memref<8x8xf32, #tpu.memory_space<vmem>>, vector<1x8xf32>
    tpu.vector_store %arg3[%27, %c0_6], %26 {strides = array<i32>} : memref<8x8xf32, #tpu.memory_space<vmem>>, vector<1x8xf32>,
    %c4_i32 = arith.constant 4 : i32
    %29 = arith.addi %0, %c4_i32 : i32
    %30 = arith.index_cast %29 : i32 to index
    %31 = memref.load %arg1[%30] : memref<8xi32, #tpu.memory_space<smem>>
    %32 = arith.index_cast %31 : i32 to index
    %c0_7 = arith.constant 0 : index
    %33 = vector.load %arg2[%32, %c0_7] : memref<16x8xf32, #tpu.memory_space<vmem>>, vector<1x8xf32>
    %34 = arith.index_cast %c4_i32 : i32 to index
    %c0_8 = arith.constant 0 : index
    %35 = vector.load %arg3[%34, %c0_8] : memref<8x8xf32, #tpu.memory_space<vmem>>, vector<1x8xf32>
    tpu.vector_store %arg3[%34, %c0_8], %33 {strides = array<i32>} : memref<8x8xf32, #tpu.memory_space<vmem>>, vector<1x8xf32>,
    %c5_i32 = arith.constant 5 : i32
    %36 = arith.addi %0, %c5_i32 : i32
    %37 = arith.index_cast %36 : i32 to index
    %38 = memref.load %arg1[%37] : memref<8xi32, #tpu.memory_space<smem>>
    %39 = arith.index_cast %38 : i32 to index
    %c0_9 = arith.constant 0 : index
    %40 = vector.load %arg2[%39, %c0_9] : memref<16x8xf32, #tpu.memory_space<vmem>>, vector<1x8xf32>
    %41 = arith.index_cast %c5_i32 : i32 to index
    %c0_10 = arith.constant 0 : index
    %42 = vector.load %arg3[%41, %c0_10] : memref<8x8xf32, #tpu.memory_space<vmem>>, vector<1x8xf32>
    tpu.vector_store %arg3[%41, %c0_10], %40 {strides = array<i32>} : memref<8x8xf32, #tpu.memory_space<vmem>>, vector<1x8xf32>,
    %c6_i32 = arith.constant 6 : i32
    %43 = arith.addi %0, %c6_i32 : i32
    %44 = arith.index_cast %43 : i32 to index
    %45 = memref.load %arg1[%44] : memref<8xi32, #tpu.memory_space<smem>>
    %46 = arith.index_cast %45 : i32 to index
    %c0_11 = arith.constant 0 : index
    %47 = vector.load %arg2[%46, %c0_11] : memref<16x8xf32, #tpu.memory_space<vmem>>, vector<1x8xf32>
    %48 = arith.index_cast %c6_i32 : i32 to index
    %c0_12 = arith.constant 0 : index
    %49 = vector.load %arg3[%48, %c0_12] : memref<8x8xf32, #tpu.memory_space<vmem>>, vector<1x8xf32>
    tpu.vector_store %arg3[%48, %c0_12], %47 {strides = array<i32>} : memref<8x8xf32, #tpu.memory_space<vmem>>, vector<1x8xf32>,
    %c7_i32 = arith.constant 7 : i32
    %50 = arith.addi %0, %c7_i32 : i32
    %51 = arith.index_cast %50 : i32 to index
    %52 = memref.load %arg1[%51] : memref<8xi32, #tpu.memory_space<smem>>
    %53 = arith.index_cast %52 : i32 to index
    %c0_13 = arith.constant 0 : index
    %54 = vector.load %arg2[%53, %c0_13] : memref<16x8xf32, #tpu.memory_space<vmem>>, vector<1x8xf32>
    %55 = arith.index_cast %c7_i32 : i32 to index
    %c0_14 = arith.constant 0 : index
    %56 = vector.load %arg3[%55, %c0_14] : memref<8x8xf32, #tpu.memory_space<vmem>>, vector<1x8xf32>
    tpu.vector_store %arg3[%55, %c0_14], %54 {strides = array<i32>} : memref<8x8xf32, #tpu.memory_space<vmem>>, vector<1x8xf32>,
    %c8_i32_15 = arith.constant 8 : i32
    return
  }
  func.func @transform_0(%arg0: i32, %arg1: memref<8xi32, #tpu.memory_space<smem>>) -> (i32, i32) {
    %c0_i32 = arith.constant 0 : i32
    %c0_i32_0 = arith.constant 0 : i32
    %c0_i32_1 = arith.constant 0 : i32
    return %c0_i32, %c0_i32_0 : i32, i32
  }
  func.func @transform_1(%arg0: i32, %arg1: memref<8xi32, #tpu.memory_space<smem>>) -> (i32, i32) {
    %c0_i32 = arith.constant 0 : i32
    %c0_i32_0 = arith.constant 0 : i32
    return %arg0, %c0_i32 : i32, i32
  }
}

</mosaic_0001>

<llo_original>
// kernel: tpu_custom_call.1
$region0: #{tpu_custom_call.1}
  #allocation0 [shape = 'u32[]', space=smem, size = 0x4, offset = 0x4, fixed_abs, tag = 'smem constant byte address 0x4 - core index']
  #allocation1 [shape = 'u32[144,128]{1,0:T(1,128)}', space=vmem, size = 0x12000, scoped, tag = 'internal scratch']
  #allocation2 [shape = 's32[1]{0}', space=sflag, size = 0x4, scoped, tag = 'scoped memory for tpu_custom_call.1']
  #allocation3 [shape = 'u8[512]{0}', space=smem, size = 0x200, scoped, tag = 'prefetched SMEM operand 0']
  %s0 = inlined_call_operand.vmem [shape: s32[8], index: 0, kind: input, shape index: {}]
  %s1 = inlined_call_operand.vmem [shape: f32[16,8], index: 1, kind: input, shape index: {}]
  %s2 = inlined_call_operand.hbm [shape: f32[8,8], index: 2, kind: output, shape index: {}]
  %s3 = sld [smem:[#allocation0]]
  $region14: #{tpu_custom_call.1} parent=0
    _
  %s5 = ssub.s32 1, %s3
  %s6 = scalar_select 0, %s5, %s3
  %s7 = sshll.u32 %s0, 4
  %s8 = int_to_ptr.vmem [resolvable:$true] %s7
  %10 = dma.vmem_to_smem %s8, 16, [#allocation3], [#allocation2]
  %11 = dma.done [#allocation2], 16
  %12 = sfence
  $region1: #{tpu_custom_call.1} parent=0
    #allocation4 [shape = 'u8[4096]{0}', space=vmem, size = 0x1000, scoped, tag = 'output window, operand 0, single buffered']
    #allocation5 [shape = 's32[1]{0}', space=sflag, size = 0x4, scoped, tag = 'scoped memory for tpu_custom_call.1']
    %13 = vsyncpa [#allocation5], 0
    // Predicated region
    $region2: #{tpu_custom_call.1} parent=1 // pred_check
      _
    $region3: #{tpu_custom_call.1} parent=1 // pred_check_branch
      %15 = sbr.rel (0) target = $region5
    $region4: #{tpu_custom_call.1} parent=1 // pred_region
      _
    $region5: #{tpu_custom_call.1} parent=1 // pred_fallthru
      _
    %s16 = smul.u32 0, 8
    %s17 = sld [smem:[#allocation3 + %s16]]
    %s18 = scalar_lea.vmem %s1, %s17
    %v19 = vld [vmem:[%s18] sm:$0x1]
    %vm20 = vcmask 57344
    %21 = vst.msk [vmem:[#allocation4] sm:$0x1] %vm20, %v19
    %s22 = sadd.s32 %s16, 1
    %s23 = sld [smem:[#allocation3 + %s22]]
    %s24 = scalar_lea.vmem %s1, %s23
    %v25 = vld [vmem:[%s24] sm:$0x1]
    %26 = vst.msk [vmem:[#allocation4 + $0x1] sm:$0x1] %vm20, %v25
    %s27 = sadd.s32 %s16, 2
    %s28 = sld [smem:[#allocation3 + %s27]]
    %s29 = scalar_lea.vmem %s1, %s28
    %v30 = vld [vmem:[%s29] sm:$0x1]
    %31 = vst.msk [vmem:[#allocation4 + $0x2] sm:$0x1] %vm20, %v30
    %s32 = sadd.s32 %s16, 3
    %s33 = sld [smem:[#allocation3 + %s32]]
    %s34 = scalar_lea.vmem %s1, %s33
    %v35 = vld [vmem:[%s34] sm:$0x1]
    %36 = vst.msk [vmem:[#allocation4 + $0x3] sm:$0x1] %vm20, %v35
    %s37 = sadd.s32 %s16, 4
    %s38 = sld [smem:[#allocation3 + %s37]]
    %s39 = scalar_lea.vmem %s1, %s38
    %v40 = vld [vmem:[%s39] sm:$0x1]
    %41 = vst.msk [vmem:[#allocation4 + $0x4] sm:$0x1] %vm20, %v40
    %s42 = sadd.s32 %s16, 5
    %s43 = sld [smem:[#allocation3 + %s42]]
    %s44 = scalar_lea.vmem %s1, %s43
    %v45 = vld [vmem:[%s44] sm:$0x1]
    %46 = vst.msk [vmem:[#allocation4 + $0x5] sm:$0x1] %vm20, %v45
    %s47 = sadd.s32 %s16, 6
    %s48 = sld [smem:[#allocation3 + %s47]]
    %s49 = scalar_lea.vmem %s1, %s48
    %v50 = vld [vmem:[%s49] sm:$0x1]
    %51 = vst.msk [vmem:[#allocation4 + $0x6] sm:$0x1] %vm20, %v50
    %s52 = sadd.s32 %s16, 7
    %s53 = sld [smem:[#allocation3 + %s52]]
    %s54 = scalar_lea.vmem %s1, %s53
    %v55 = vld [vmem:[%s54] sm:$0x1]
    %56 = vst.msk [vmem:[#allocation4 + $0x7] sm:$0x1] %vm20, %v55
    // Predicated region
    $region6: #{tpu_custom_call.1} parent=1 // pred_check
      _
    $region7: #{tpu_custom_call.1} parent=1 // pred_check_branch
      %58 = sbr.rel (0) target = $region9
    $region8: #{tpu_custom_call.1} parent=1 // pred_region
      %s60 = ssub.s32 128, 128
      %61 = vsyncadd [#allocation5], %s60
      %s63 = sshll.u32 [#allocation4], 4
      %s64 = int_to_ptr.vmem [resolvable:$true] %s63
      %66 = dma.vmem_to_hbm [thread:$0]  %s64, 128, %s2, [#allocation5]
    $region9: #{tpu_custom_call.1} parent=1 // pred_fallthru
      _
    // Predicated region
    $region10: #{tpu_custom_call.1} parent=1 // pred_check
      _
    $region11: #{tpu_custom_call.1} parent=1 // pred_check_branch
      %68 = sbr.rel (0) target = $region13
    $region12: #{tpu_custom_call.1} parent=1 // pred_region
      %69 = dma.done [#allocation5], 128
    $region13: #{tpu_custom_call.1} parent=1 // pred_fallthru
      _
    %70 = vsyncpa [#allocation5], 1

</llo_original>
